<compile_context>
chip_gen: v7x
topology: tpu7x:2x2x1
jax: 0.10.0
libtpu: 0.0.40
codegen_flags: <defaults>
</compile_context>

<pallas_src>
import jax
import jax.numpy as jnp
import numpy as np
from jax.experimental import pallas as pl
from jax.experimental.pallas import tpu as pltpu

EMB = 32                    # embedding_dim
SEQ = 8                     # encoder_outputs sequence length (unused by returned values)
NUM_NODES = 8               # p_net_num_nodes
NUM_ACTIONS = NUM_NODES     # allow_revocable=False, allow_rejection=False
LANES = 128                 # lane-dense slab width
SQRT2_INV = 0.7071067811865476


# ----------------------------- kernel-side math helpers -----------------------------
def _erf(x):
    # Abramowitz & Stegun 7.1.26 rational approximation (|err| < 1.5e-7): matches the
    # exact (erf-based) GELU of nn.GELU() to float32 precision, using only ops that
    # lower cleanly in Mosaic (exp / abs / select / arithmetic).
    p = 0.3275911
    a1, a2, a3, a4, a5 = (0.254829592, -0.284496736, 1.421413741,
                          -1.453152027, 1.061405429)
    s = jnp.where(x >= 0.0, 1.0, -1.0)
    ax = jnp.abs(x)
    t = 1.0 / (1.0 + p * ax)
    poly = ((((a5 * t + a4) * t + a3) * t + a2) * t + a1) * t
    return s * (1.0 - poly * jnp.exp(-ax * ax))


def _gelu_exact(x):
    return 0.5 * x * (1.0 + _erf(x * SQRT2_INV))


def _sigmoid(x):
    # exact form (exp runs on the EUP); kept full-precision to meet the 2e-5 tolerance.
    return 1.0 / (1.0 + jnp.exp(-x))


# ------------------------------------ kernel ------------------------------------
def decoder_kernel(pid_ref, emb_ref, h_ref,
                   wh_ref, bh_ref, wx_ref, bx_ref, w2_ref, b2_ref,
                   out_ref):
    f32 = jnp.float32
    E = EMB

    pid = pid_ref[0]                 # scalar int32 from SMEM
    x = emb_ref[pid]                 # (1, E)   embedding row (dynamic leading-dim index)
    h = h_ref[...]                   # (1, E)   hidden state (batch=1)

    # ---- two fused lane-dense matmuls cover all h- and x-projections ----
    # wh = [w_hr | w_hz | w_hn | w1],  bh = [b_hr | b_hz | b_hn | b1]
    # wx = [w_ir | w_iz | w_in | 0 ],  bx = [b_ir | b_iz | b_in | 0 ]
    h_proj = jnp.dot(h, wh_ref[...], preferred_element_type=f32) + bh_ref[...]   # (1, 128)
    x_proj = jnp.dot(x, wx_ref[...], preferred_element_type=f32) + bx_ref[...]   # (1, 128)

    # ---- GRU step (1 layer, seq_len = 1), PyTorch gate equations ----
    r = _sigmoid(x_proj[:, 0:E] + h_proj[:, 0:E])
    z = _sigmoid(x_proj[:, E:2 * E] + h_proj[:, E:2 * E])
    n = jnp.tanh(x_proj[:, 2 * E:3 * E] + r * h_proj[:, 2 * E:3 * E])
    h_new = (1.0 - z) * n + z * h                                                 # (1, E)

    # ---- output head: Linear -> GELU (exact) -> Linear (w2 zero-padded to 128) ----
    g1 = _gelu_exact(h_proj[:, 3 * E:4 * E])                                      # (1, E)
    logits_full = jnp.dot(g1, w2_ref[...], preferred_element_type=f32) + b2_ref[...]  # (1, 128)

    # ---- single lane-dense output slab: row 0 = logits, row 1 = new hidden ----
    out_ref[0:1, :] = logits_full
    out_ref[1:2, :] = jnp.concatenate(
        [h_new, jnp.zeros((1, LANES - E), f32)], axis=-1)


# ------------------------------------ wrapper ------------------------------------
def pack_params(params):
    """Pack PyTorch-style per-gate weights into lane-dense kernel slabs (host-side, once)."""
    E = EMB
    f32 = jnp.float32
    zeros_w = jnp.zeros((E, E), f32)
    zeros_b = jnp.zeros((1, E), f32)
    wh = jnp.concatenate([params['w_hr'], params['w_hz'], params['w_hn'], params['w1']], axis=1)
    bh = jnp.concatenate([params['b_hr'], params['b_hz'], params['b_hn'], params['b1']], axis=1)
    wx = jnp.concatenate([params['w_ir'], params['w_iz'], params['w_in'], zeros_w], axis=1)
    bx = jnp.concatenate([params['b_ir'], params['b_iz'], params['b_in'], zeros_b], axis=1)
    w2 = jnp.pad(params['w2'], ((0, 0), (0, LANES - NUM_ACTIONS)))
    b2 = jnp.pad(params['b2'], ((0, 0), (0, LANES - NUM_ACTIONS)))
    emb = params['emb'].reshape(-1, 1, E)        # (num_actions+1, 1, E) for leading-dim gather
    return {'emb': emb.astype(f32), 'wh': wh.astype(f32), 'bh': bh.astype(f32),
            'wx': wx.astype(f32), 'bx': bx.astype(f32),
            'w2': w2.astype(f32), 'b2': b2.astype(f32)}


def actor_forward(packed, obs):
    # encoder_outputs / mask / p_net are dead w.r.t. the Actor's returned tuple and
    # never enter the kernel.
    hidden_state = obs['hidden_state']            # (1, 1, E)  (num_layers, batch, E)
    p_node_id = obs['p_node_id']                  # (1,) int32

    E = hidden_state.shape[-1]
    h = hidden_state.reshape(1, E).astype(jnp.float32)

    vmem = pl.BlockSpec(memory_space=pltpu.MemorySpace.VMEM)
    smem = pl.BlockSpec(memory_space=pltpu.MemorySpace.SMEM)

    out = pl.pallas_call(
        decoder_kernel,
        out_shape=jax.ShapeDtypeStruct((2, LANES), jnp.float32),
        in_specs=[smem, vmem, vmem, vmem, vmem, vmem, vmem, vmem, vmem],
        out_specs=vmem,
    )(p_node_id.astype(jnp.int32),
      packed['emb'], h,
      packed['wh'], packed['bh'],
      packed['wx'], packed['bx'],
      packed['w2'], packed['b2'])

    logits = out[0:1, 0:NUM_ACTIONS]              # (1, num_actions)
    h_new = out[1:2, 0:E]                         # (1, E)
    outputs = h_new.reshape(1, 1, E)              # GRU outputs (seq=1, batch=1, E)
    new_hidden = h_new.reshape(1, 1, E)           # GRU final hidden (layers=1, batch=1, E)
    return logits, outputs, new_hidden


# --------------------------------- params / reference ---------------------------------
def init_params(key, emb_dim=EMB, num_actions=NUM_ACTIONS):
    ks = jax.random.split(key, 16)
    n = lambda k, shape: (0.1 * jax.random.normal(k, shape)).astype(jnp.float32)
    E = emb_dim
    return {
        'emb':  n(ks[0], (num_actions + 1, E)),
        # output head (weights stored as (in, out))
        'w1':   n(ks[1], (E, E)), 'b1': n(ks[2], (1, E)),
        'w2':   n(ks[3], (E, num_actions)), 'b2': n(ks[4], (1, num_actions)),
        # GRU gates (r, z, n), input-hidden and hidden-hidden, (in, out) layout
        'w_ir': n(ks[9], (E, E)),  'w_iz': n(ks[10], (E, E)), 'w_in': n(ks[11], (E, E)),
        'w_hr': n(ks[12], (E, E)), 'w_hz': n(ks[13], (E, E)), 'w_hn': n(ks[14], (E, E)),
        'b_ir': n(ks[15], (1, E)), 'b_iz': n(ks[15], (1, E)) * 0.5,
        'b_in': n(ks[15], (1, E)) * 0.25,
        'b_hr': n(ks[15], (1, E)) * -0.5, 'b_hz': n(ks[15], (1, E)) * -0.25,
        'b_hn': n(ks[15], (1, E)) * 0.75,
    }


def reference_forward(params, obs):
    """Pure-JAX reference mirroring the PyTorch semantics (for validation)."""
    E = EMB
    h = obs['hidden_state'].reshape(1, E)
    x = params['emb'][obs['p_node_id']].reshape(1, E)
    logits = (jax.nn.gelu(h @ params['w1'] + params['b1'], approximate=False)
              @ params['w2'] + params['b2'])
    # GRU (PyTorch gate equations)
    r = jax.nn.sigmoid(x @ params['w_ir'] + params['b_ir'] + h @ params['w_hr'] + params['b_hr'])
    z = jax.nn.sigmoid(x @ params['w_iz'] + params['b_iz'] + h @ params['w_hz'] + params['b_hz'])
    n = jnp.tanh(x @ params['w_in'] + params['b_in'] + r * (h @ params['w_hn'] + params['b_hn']))
    h_new = (1.0 - z) * n + z * h
    return logits, h_new.reshape(1, 1, E), h_new.reshape(1, 1, E)


if __name__ == "__main__":
    key = jax.random.PRNGKey(0)
    k_p, k_h, k_e = jax.random.split(key, 3)

    params = init_params(k_p)
    packed = pack_params(params)
    obs = {
        'hidden_state':    (0.1 * jax.random.normal(k_h, (1, 1, EMB))).astype(jnp.float32),
        'encoder_outputs': (0.1 * jax.random.normal(k_e, (1, SEQ, EMB))).astype(jnp.float32),
        'mask':            jnp.array([[1, 1, 1, 0, 1, 1, 0, 1]], dtype=jnp.float32),
        'p_node_id':       jnp.array([3], dtype=jnp.int32),
        # obs['p_net'] intentionally omitted: GCN branch is dead code in the reference.
    }

    logits, outputs, hidden_state = actor_forward(packed, obs)
    jax.block_until_ready((logits, outputs, hidden_state))

    ref_logits, ref_outputs, ref_hidden = reference_forward(params, obs)
    np.testing.assert_allclose(np.asarray(logits), np.asarray(ref_logits), atol=2e-5, rtol=1e-5)
    np.testing.assert_allclose(np.asarray(outputs), np.asarray(ref_outputs), atol=2e-5, rtol=1e-5)
    np.testing.assert_allclose(np.asarray(hidden_state), np.asarray(ref_hidden), atol=2e-5, rtol=1e-5)

    print("KERNEL_OK")
</pallas_src>

<mosaic_0001>
module attributes {stable_mosaic.version = 11 : i64} {
  func.func @decoder_kernel(%arg0: memref<1xi32, #tpu.memory_space<smem>>, %arg1: memref<9x1x32xf32, #tpu.memory_space<vmem>>, %arg2: memref<1x32xf32, #tpu.memory_space<vmem>>, %arg3: memref<32x128xf32, #tpu.memory_space<vmem>>, %arg4: memref<1x128xf32, #tpu.memory_space<vmem>>, %arg5: memref<32x128xf32, #tpu.memory_space<vmem>>, %arg6: memref<1x128xf32, #tpu.memory_space<vmem>>, %arg7: memref<32x128xf32, #tpu.memory_space<vmem>>, %arg8: memref<1x128xf32, #tpu.memory_space<vmem>>, %arg9: memref<2x128xf32, #tpu.memory_space<vmem>>) attributes {dimension_semantics = [], scalar_prefetch = 0 : i64, scratch_operands = 0 : i64, tpu.core_type = #tpu.core_type<tc>} {
    %c0 = arith.constant 0 : index
    %0 = memref.load %arg0[%c0] : memref<1xi32, #tpu.memory_space<smem>>
    %1 = arith.index_cast %0 : i32 to index
    %c0_0 = arith.constant 0 : index
    %c0_1 = arith.constant 0 : index
    %2 = vector.load %arg1[%1, %c0_0, %c0_1] : memref<9x1x32xf32, #tpu.memory_space<vmem>>, vector<1x1x32xf32>
    %3 = vector.shape_cast %2 : vector<1x1x32xf32> to vector<1x32xf32>
    %c0_2 = arith.constant 0 : index
    %c0_3 = arith.constant 0 : index
    %4 = vector.load %arg2[%c0_2, %c0_3] : memref<1x32xf32, #tpu.memory_space<vmem>>, vector<1x32xf32>
    %c0_4 = arith.constant 0 : index
    %c0_5 = arith.constant 0 : index
    %5 = vector.load %arg3[%c0_4, %c0_5] : memref<32x128xf32, #tpu.memory_space<vmem>>, vector<32x128xf32>
    %cst = arith.constant dense<0.000000e+00> : vector<1x128xf32>
    %6 = tpu.matmul %4, %5, %cst {dimension_numbers = #tpu.dot_dimension_numbers<[1], [0], [0], [1], [0, 0, 1, 1], [], []>} : vector<1x32xf32>, vector<32x128xf32>, vector<1x128xf32> -> vector<1x128xf32>
    %c0_6 = arith.constant 0 : index
    %c0_7 = arith.constant 0 : index
    %7 = vector.load %arg4[%c0_6, %c0_7] : memref<1x128xf32, #tpu.memory_space<vmem>>, vector<1x128xf32>
    %8 = arith.addf %6, %7 : vector<1x128xf32>
    %c0_8 = arith.constant 0 : index
    %c0_9 = arith.constant 0 : index
    %9 = vector.load %arg5[%c0_8, %c0_9] : memref<32x128xf32, #tpu.memory_space<vmem>>, vector<32x128xf32>
    %cst_10 = arith.constant dense<0.000000e+00> : vector<1x128xf32>
    %10 = tpu.matmul %3, %9, %cst_10 {dimension_numbers = #tpu.dot_dimension_numbers<[1], [0], [0], [1], [0, 0, 1, 1], [], []>} : vector<1x32xf32>, vector<32x128xf32>, vector<1x128xf32> -> vector<1x128xf32>
    %c0_11 = arith.constant 0 : index
    %c0_12 = arith.constant 0 : index
    %11 = vector.load %arg6[%c0_11, %c0_12] : memref<1x128xf32, #tpu.memory_space<vmem>>, vector<1x128xf32>
    %12 = arith.addf %10, %11 : vector<1x128xf32>
    %13 = vector.extract_strided_slice %12 {offsets = [0, 0], sizes = [1, 32], strides = [1, 1]} : vector<1x128xf32> to vector<1x32xf32>
    %14 = vector.extract_strided_slice %8 {offsets = [0, 0], sizes = [1, 32], strides = [1, 1]} : vector<1x128xf32> to vector<1x32xf32>
    %15 = arith.addf %13, %14 : vector<1x32xf32>
    %cst_13 = arith.constant 0.000000e+00 : f32
    %16 = vector.broadcast %cst_13 : f32 to vector<1x32xf32>
    %17 = arith.subf %16, %15 : vector<1x32xf32>
    %18 = math.exp %17 : vector<1x32xf32>
    %cst_14 = arith.constant 1.000000e+00 : f32
    %19 = vector.broadcast %cst_14 : f32 to vector<1x32xf32>
    %20 = arith.addf %19, %18 : vector<1x32xf32>
    %cst_15 = arith.constant 1.000000e+00 : f32
    %21 = vector.broadcast %cst_15 : f32 to vector<1x32xf32>
    %22 = arith.divf %21, %20 : vector<1x32xf32>
    %23 = vector.extract_strided_slice %12 {offsets = [0, 32], sizes = [1, 32], strides = [1, 1]} : vector<1x128xf32> to vector<1x32xf32>
    %24 = vector.extract_strided_slice %8 {offsets = [0, 32], sizes = [1, 32], strides = [1, 1]} : vector<1x128xf32> to vector<1x32xf32>
    %25 = arith.addf %23, %24 : vector<1x32xf32>
    %cst_16 = arith.constant 0.000000e+00 : f32
    %26 = vector.broadcast %cst_16 : f32 to vector<1x32xf32>
    %27 = arith.subf %26, %25 : vector<1x32xf32>
    %28 = math.exp %27 : vector<1x32xf32>
    %cst_17 = arith.constant 1.000000e+00 : f32
    %29 = vector.broadcast %cst_17 : f32 to vector<1x32xf32>
    %30 = arith.addf %29, %28 : vector<1x32xf32>
    %cst_18 = arith.constant 1.000000e+00 : f32
    %31 = vector.broadcast %cst_18 : f32 to vector<1x32xf32>
    %32 = arith.divf %31, %30 : vector<1x32xf32>
    %33 = vector.extract_strided_slice %12 {offsets = [0, 64], sizes = [1, 32], strides = [1, 1]} : vector<1x128xf32> to vector<1x32xf32>
    %34 = vector.extract_strided_slice %8 {offsets = [0, 64], sizes = [1, 32], strides = [1, 1]} : vector<1x128xf32> to vector<1x32xf32>
    %35 = arith.mulf %22, %34 : vector<1x32xf32>
    %36 = arith.addf %33, %35 : vector<1x32xf32>
    %37 = math.tanh %36 : vector<1x32xf32>
    %cst_19 = arith.constant 1.000000e+00 : f32
    %38 = vector.broadcast %cst_19 : f32 to vector<1x32xf32>
    %39 = arith.subf %38, %32 : vector<1x32xf32>
    %40 = arith.mulf %39, %37 : vector<1x32xf32>
    %41 = arith.mulf %32, %4 : vector<1x32xf32>
    %42 = arith.addf %40, %41 : vector<1x32xf32>
    %43 = vector.extract_strided_slice %8 {offsets = [0, 96], sizes = [1, 32], strides = [1, 1]} : vector<1x128xf32> to vector<1x32xf32>
    %cst_20 = arith.constant 5.000000e-01 : f32
    %44 = vector.broadcast %cst_20 : f32 to vector<1x32xf32>
    %45 = arith.mulf %44, %43 : vector<1x32xf32>
    %cst_21 = arith.constant 0.707106769 : f32
    %46 = vector.broadcast %cst_21 : f32 to vector<1x32xf32>
    %47 = arith.mulf %43, %46 : vector<1x32xf32>
    %cst_22 = arith.constant 0.000000e+00 : f32
    %48 = vector.broadcast %cst_22 : f32 to vector<1x32xf32>
    %49 = arith.cmpf oge, %47, %48 : vector<1x32xf32>
    %cst_23 = arith.constant 1.000000e+00 : f32
    %cst_24 = arith.constant -1.000000e+00 : f32
    %50 = vector.broadcast %cst_23 : f32 to vector<1x32xf32>
    %51 = vector.broadcast %cst_24 : f32 to vector<1x32xf32>
    %52 = arith.select %49, %50, %51 : vector<1x32xi1>, vector<1x32xf32>
    %53 = math.absf %47 : vector<1x32xf32>
    %cst_25 = arith.constant 0.327591091 : f32
    %54 = vector.broadcast %cst_25 : f32 to vector<1x32xf32>
    %55 = arith.mulf %54, %53 : vector<1x32xf32>
    %cst_26 = arith.constant 1.000000e+00 : f32
    %56 = vector.broadcast %cst_26 : f32 to vector<1x32xf32>
    %57 = arith.addf %56, %55 : vector<1x32xf32>
    %cst_27 = arith.constant 1.000000e+00 : f32
    %58 = vector.broadcast %cst_27 : f32 to vector<1x32xf32>
    %59 = arith.divf %58, %57 : vector<1x32xf32>
    %cst_28 = arith.constant 1.06140542 : f32
    %60 = vector.broadcast %cst_28 : f32 to vector<1x32xf32>
    %61 = arith.mulf %60, %59 : vector<1x32xf32>
    %cst_29 = arith.constant -1.45315206 : f32
    %62 = vector.broadcast %cst_29 : f32 to vector<1x32xf32>
    %63 = arith.addf %61, %62 : vector<1x32xf32>
    %64 = arith.mulf %63, %59 : vector<1x32xf32>
    %cst_30 = arith.constant 1.42141378 : f32
    %65 = vector.broadcast %cst_30 : f32 to vector<1x32xf32>
    %66 = arith.addf %64, %65 : vector<1x32xf32>
    %67 = arith.mulf %66, %59 : vector<1x32xf32>
    %cst_31 = arith.constant -0.284496725 : f32
    %68 = vector.broadcast %cst_31 : f32 to vector<1x32xf32>
    %69 = arith.addf %67, %68 : vector<1x32xf32>
    %70 = arith.mulf %69, %59 : vector<1x32xf32>
    %cst_32 = arith.constant 0.254829586 : f32
    %71 = vector.broadcast %cst_32 : f32 to vector<1x32xf32>
    %72 = arith.addf %70, %71 : vector<1x32xf32>
    %73 = arith.mulf %72, %59 : vector<1x32xf32>
    %cst_33 = arith.constant 0.000000e+00 : f32
    %74 = vector.broadcast %cst_33 : f32 to vector<1x32xf32>
    %75 = arith.subf %74, %53 : vector<1x32xf32>
    %76 = arith.mulf %75, %53 : vector<1x32xf32>
    %77 = math.exp %76 : vector<1x32xf32>
    %78 = arith.mulf %73, %77 : vector<1x32xf32>
    %cst_34 = arith.constant 1.000000e+00 : f32
    %79 = vector.broadcast %cst_34 : f32 to vector<1x32xf32>
    %80 = arith.subf %79, %78 : vector<1x32xf32>
    %81 = arith.mulf %52, %80 : vector<1x32xf32>
    %cst_35 = arith.constant 1.000000e+00 : f32
    %82 = vector.broadcast %cst_35 : f32 to vector<1x32xf32>
    %83 = arith.addf %82, %81 : vector<1x32xf32>
    %84 = arith.mulf %45, %83 : vector<1x32xf32>
    %c0_36 = arith.constant 0 : index
    %c0_37 = arith.constant 0 : index
    %85 = vector.load %arg7[%c0_36, %c0_37] : memref<32x128xf32, #tpu.memory_space<vmem>>, vector<32x128xf32>
    %cst_38 = arith.constant dense<0.000000e+00> : vector<1x128xf32>
    %86 = tpu.matmul %84, %85, %cst_38 {dimension_numbers = #tpu.dot_dimension_numbers<[1], [0], [0], [1], [0, 0, 1, 1], [], []>} : vector<1x32xf32>, vector<32x128xf32>, vector<1x128xf32> -> vector<1x128xf32>
    %c0_39 = arith.constant 0 : index
    %c0_40 = arith.constant 0 : index
    %87 = vector.load %arg8[%c0_39, %c0_40] : memref<1x128xf32, #tpu.memory_space<vmem>>, vector<1x128xf32>
    %88 = arith.addf %86, %87 : vector<1x128xf32>
    %c0_41 = arith.constant 0 : index
    %c0_42 = arith.constant 0 : index
    %89 = vector.load %arg9[%c0_41, %c0_42] : memref<2x128xf32, #tpu.memory_space<vmem>>, vector<1x128xf32>
    tpu.vector_store %arg9[%c0_41, %c0_42], %88 {strides = array<i32>} : memref<2x128xf32, #tpu.memory_space<vmem>>, vector<1x128xf32>,
    %cst_43 = arith.constant 0.000000e+00 : f32
    %90 = vector.broadcast %cst_43 : f32 to vector<1x96xf32>
    %91 = tpu.concatenate %42, %90 in 1 : vector<1x32xf32>, vector<1x96xf32> -> vector<1x128xf32>
    %c1 = arith.constant 1 : index
    %c0_44 = arith.constant 0 : index
    %92 = vector.load %arg9[%c1, %c0_44] : memref<2x128xf32, #tpu.memory_space<vmem>>, vector<1x128xf32>
    tpu.vector_store %arg9[%c1, %c0_44], %91 {strides = array<i32>} : memref<2x128xf32, #tpu.memory_space<vmem>>, vector<1x128xf32>,
    return
  }
}

</mosaic_0001>

<llo_original>
// kernel: tpu_custom_call.1
$region0: #{tpu_custom_call.1}
  #allocation0 [shape = 'u32[]', space=smem, size = 0x4, offset = 0x4, fixed_abs, tag = 'smem constant byte address 0x4 - core index']
  #allocation1 [shape = 'u32[144,128]{1,0:T(1,128)}', space=vmem, size = 0x12000, scoped, tag = 'internal scratch']
  #allocation2 [shape = 's32[1]{0:T(128)S(6)}', space=smem, size = 0x200, scoped, tag = 'scoped memory for tpu_custom_call.1']
  %s0 = inlined_call_operand.<no memory space> [shape: s32[1], index: 0, kind: input, shape index: {}]
  %s1 = inlined_call_operand.hbm [shape: f32[9,1,32], index: 1, kind: input, shape index: {}]
  %s2 = inlined_call_operand.vmem [shape: f32[1,32], index: 2, kind: input, shape index: {}]
  %s3 = inlined_call_operand.hbm [shape: f32[32,128], index: 3, kind: input, shape index: {}]
  %s4 = inlined_call_operand.vmem [shape: f32[1,128], index: 4, kind: input, shape index: {}]
  %s5 = inlined_call_operand.hbm [shape: f32[32,128], index: 5, kind: input, shape index: {}]
  %s6 = inlined_call_operand.vmem [shape: f32[1,128], index: 6, kind: input, shape index: {}]
  %s7 = inlined_call_operand.hbm [shape: f32[32,128], index: 7, kind: input, shape index: {}]
  %s8 = inlined_call_operand.vmem [shape: f32[1,128], index: 8, kind: input, shape index: {}]
  %s9 = inlined_call_operand.hbm [shape: f32[2,128], index: 9, kind: output, shape index: {}]
  %s10 = sld [smem:[#allocation0]]
  $region62: #{tpu_custom_call.1} parent=0
    _
  %s12 = ssub.s32 1, %s10
  %s13 = scalar_select 0, %s12, %s10
  %14 = sst [smem:[#allocation2]] %s0
  $region1: #{tpu_custom_call.1} parent=0
    #allocation3 [shape = 'u8[4608]{0}', space=vmem, size = 0x1400, scoped, tag = 'input window, operand 1, single buffered']
    #allocation4 [shape = 's32[1]{0}', space=sflag, size = 0x4, scoped, tag = 'scoped memory for tpu_custom_call.1']
    #allocation5 [shape = 's32[1]{0}', space=sflag, size = 0x4, scoped, tag = 'scoped memory for tpu_custom_call.1']
    #allocation6 [shape = 'u8[16384]{0}', space=vmem, size = 0x4000, scoped, tag = 'input window, operand 3, single buffered']
    #allocation7 [shape = 's32[1]{0}', space=sflag, size = 0x4, scoped, tag = 'scoped memory for tpu_custom_call.1']
    #allocation8 [shape = 'u8[16384]{0}', space=vmem, size = 0x4000, scoped, tag = 'input window, operand 5, single buffered']
    #allocation9 [shape = 'u8[16384]{0}', space=vmem, size = 0x4000, scoped, tag = 'input window, operand 7, single buffered']
    #allocation10 [shape = 's32[1]{0}', space=sflag, size = 0x4, scoped, tag = 'scoped memory for tpu_custom_call.1']
    #allocation11 [shape = 'u8[1024]{0}', space=vmem, size = 0x400, scoped, tag = 'output window, operand 0, single buffered']
    %15 = vsyncpa [#allocation4], 0
    %16 = vsyncpa [#allocation7], 0
    %17 = vsyncpa [#allocation10], 0
    %18 = vsyncpa [#allocation5], 0
    // Predicated region
    $region2: #{tpu_custom_call.1} parent=1 // pred_check
      _
    $region3: #{tpu_custom_call.1} parent=1 // pred_check_branch
      %20 = sbr.rel (0) target = $region5
    $region4: #{tpu_custom_call.1} parent=1 // pred_region
      _
    $region5: #{tpu_custom_call.1} parent=1 // pred_fallthru
      _
    // Predicated region
    $region6: #{tpu_custom_call.1} parent=1 // pred_check
      _
    $region7: #{tpu_custom_call.1} parent=1 // pred_check_branch
      %22 = sbr.rel (0) target = $region9
    $region8: #{tpu_custom_call.1} parent=1 // pred_region
      %s24 = ssub.s32 144, 144
      %25 = vsyncadd [#allocation4], %s24
      %s26 = sshll.u32 [#allocation3], 4
      %s27 = int_to_ptr.vmem [resolvable:$true] %s26
      %32 = dma.hbm_to_vmem [thread:$0]  %s1, 144, %s27, [#allocation4], 16, 16, 1
    $region9: #{tpu_custom_call.1} parent=1 // pred_fallthru
      _
    // Predicated region
    $region10: #{tpu_custom_call.1} parent=1 // pred_check
      _
    $region11: #{tpu_custom_call.1} parent=1 // pred_check_branch
      %34 = sbr.rel (0) target = $region13
    $region12: #{tpu_custom_call.1} parent=1 // pred_region
      _
    $region13: #{tpu_custom_call.1} parent=1 // pred_fallthru
      _
    // Predicated region
    $region14: #{tpu_custom_call.1} parent=1 // pred_check
      _
    $region15: #{tpu_custom_call.1} parent=1 // pred_check_branch
      %36 = sbr.rel (0) target = $region17
    $region16: #{tpu_custom_call.1} parent=1 // pred_region
      %s38 = ssub.s32 512, 512
      %39 = vsyncadd [#allocation7], %s38
      %s40 = sshll.u32 [#allocation6], 4
      %s41 = int_to_ptr.vmem [resolvable:$true] %s40
      %46 = dma.hbm_to_vmem [thread:$0]  %s3, 512, %s41, [#allocation7], 128, 128, 8
    $region17: #{tpu_custom_call.1} parent=1 // pred_fallthru
      _
    // Predicated region
    $region18: #{tpu_custom_call.1} parent=1 // pred_check
      _
    $region19: #{tpu_custom_call.1} parent=1 // pred_check_branch
      %48 = sbr.rel (0) target = $region21
    $region20: #{tpu_custom_call.1} parent=1 // pred_region
      _
    $region21: #{tpu_custom_call.1} parent=1 // pred_fallthru
      _
    // Predicated region
    $region22: #{tpu_custom_call.1} parent=1 // pred_check
      _
    $region23: #{tpu_custom_call.1} parent=1 // pred_check_branch
      %50 = sbr.rel (0) target = $region25
    $region24: #{tpu_custom_call.1} parent=1 // pred_region
      %s52 = ssub.s32 512, 512
      %53 = vsyncadd [#allocation7], %s52
      %s54 = sshll.u32 [#allocation8], 4
      %s55 = int_to_ptr.vmem [resolvable:$true] %s54
      %60 = dma.hbm_to_vmem [thread:$0]  %s5, 512, %s55, [#allocation7], 128, 128, 8
    $region25: #{tpu_custom_call.1} parent=1 // pred_fallthru
      _
    // Predicated region
    $region26: #{tpu_custom_call.1} parent=1 // pred_check
      _
    $region27: #{tpu_custom_call.1} parent=1 // pred_check_branch
      %62 = sbr.rel (0) target = $region29
    $region28: #{tpu_custom_call.1} parent=1 // pred_region
      _
    $region29: #{tpu_custom_call.1} parent=1 // pred_fallthru
      _
    // Predicated region
    $region30: #{tpu_custom_call.1} parent=1 // pred_check
      _
    $region31: #{tpu_custom_call.1} parent=1 // pred_check_branch
      %64 = sbr.rel (0) target = $region33
    $region32: #{tpu_custom_call.1} parent=1 // pred_region
      %s66 = ssub.s32 512, 512
      %67 = vsyncadd [#allocation10], %s66
      %s68 = sshll.u32 [#allocation9], 4
      %s69 = int_to_ptr.vmem [resolvable:$true] %s68
      %74 = dma.hbm_to_vmem [thread:$0]  %s7, 512, %s69, [#allocation10], 128, 128, 8
    $region33: #{tpu_custom_call.1} parent=1 // pred_fallthru
      _
    // Predicated region
    $region34: #{tpu_custom_call.1} parent=1 // pred_check
      _
    $region35: #{tpu_custom_call.1} parent=1 // pred_check_branch
      %76 = sbr.rel (0) target = $region37
    $region36: #{tpu_custom_call.1} parent=1 // pred_region
      _
    $region37: #{tpu_custom_call.1} parent=1 // pred_fallthru
      _
    // Predicated region
    $region38: #{tpu_custom_call.1} parent=1 // pred_check
      _
    $region39: #{tpu_custom_call.1} parent=1 // pred_check_branch
      %78 = sbr.rel (0) target = $region41
    $region40: #{tpu_custom_call.1} parent=1 // pred_region
      %79 = dma.done [#allocation4], 144
    $region41: #{tpu_custom_call.1} parent=1 // pred_fallthru
      _
    // Predicated region
    $region42: #{tpu_custom_call.1} parent=1 // pred_check
      _
    $region43: #{tpu_custom_call.1} parent=1 // pred_check_branch
      %81 = sbr.rel (0) target = $region45
    $region44: #{tpu_custom_call.1} parent=1 // pred_region
      %82 = dma.done [#allocation7], 512
    $region45: #{tpu_custom_call.1} parent=1 // pred_fallthru
      _
    // Predicated region
    $region46: #{tpu_custom_call.1} parent=1 // pred_check
      _
    $region47: #{tpu_custom_call.1} parent=1 // pred_check_branch
      %84 = sbr.rel (0) target = $region49
    $region48: #{tpu_custom_call.1} parent=1 // pred_region
      %85 = dma.done [#allocation7], 512
    $region49: #{tpu_custom_call.1} parent=1 // pred_fallthru
      _
    // Predicated region
    $region50: #{tpu_custom_call.1} parent=1 // pred_check
      _
    $region51: #{tpu_custom_call.1} parent=1 // pred_check_branch
      %87 = sbr.rel (0) target = $region53
    $region52: #{tpu_custom_call.1} parent=1 // pred_region
      %88 = dma.done [#allocation10], 512
    $region53: #{tpu_custom_call.1} parent=1 // pred_fallthru
      _
    %s89 = sld [smem:[#allocation2]]
    %s90 = scalar_lea.vmem [#allocation3], %s89
    %v91 = vld [vmem:[%s90] sm:$0x1]
    %v92 = vld [vmem:[%s2] sm:$0x1]
    %v93 = vld [vmem:[#allocation6] sm:$0xff]
    %v94 = vld [vmem:[#allocation6 + $0x8] sm:$0xff]
    %v95 = vld [vmem:[#allocation6 + $0x10] sm:$0xff]
    %v96 = vld [vmem:[#allocation6 + $0x18] sm:$0xff]
    %v97 = vld [vmem:[%s4] sm:$0x1]
    %vm98 = vcmask 261120
    %v100 = vsel %vm98, %v92, 0
    %102 = vmatprep.subr.mxu0 0.0
    %103 = vmatpush1.msra.mxu0 %v93
    %104 = vmatprep.subr.mxu0 0.0
    %105 = vmatpush1.msra.mxu0 %v94
    %106 = vmatprep.subr.mxu0 0.0
    %107 = vmatpush1.msra.mxu0 %v95
    %108 = vmatprep.subr.mxu0 0.0
    %109 = vmatpush1.msra.mxu0 %v96
    %110 = vmatprep.subr.mxu0 0.0
    %111 = vmatpush1.msra.mxu0 0.0
    %112 = vmatprep.subr.mxu0 0.0
    %113 = vmatpush1.msra.mxu0 0.0
    %114 = vmatprep.subr.mxu0 0.0
    %115 = vmatpush1.msra.mxu0 0.0
    %116 = vmatprep.subr.mxu0 0.0
    %117 = vmatpush1.msra.mxu0 0.0
    %118 = vmatprep.subr.mxu0 0.0
    %119 = vmatpush1.msra.mxu0 0.0
    %120 = vmatprep.subr.mxu0 0.0
    %121 = vmatpush1.msra.mxu0 0.0
    %122 = vmatprep.subr.mxu0 0.0
    %123 = vmatpush1.msra.mxu0 0.0
    %124 = vmatprep.subr.mxu0 0.0
    %125 = vmatpush1.msra.mxu0 0.0
    %126 = vmatprep.subr.mxu0 0.0
    %127 = vmatpush1.msra.mxu0 0.0
    %128 = vmatprep.subr.mxu0 0.0
    %129 = vmatpush1.msra.mxu0 0.0
    %130 = vmatprep.subr.mxu0 0.0
    %131 = vmatpush1.msra.mxu0 0.0
    %132 = vmatprep.subr.mxu0 0.0
    %133 = vmatpush1.msra.mxu0 0.0
    %134 = vmatprep.subr.mxu0 0.0
    %135 = vmatpush1.msra.mxu0 0.0
    %136 = vmatprep.subr.mxu0 0.0
    %137 = vmatpush1.msra.mxu0 0.0
    %138 = vmatprep.subr.mxu0 0.0
    %139 = vmatpush1.msra.mxu0 0.0
    %140 = vmatprep.subr.mxu0 0.0
    %141 = vmatpush1.msra.mxu0 0.0
    %142 = vmatprep.subr.mxu0 0.0
    %143 = vmatpush1.msra.mxu0 0.0
    %144 = vmatprep.subr.mxu0 0.0
    %145 = vmatpush1.msra.mxu0 0.0
    %146 = vmatprep.subr.mxu0 0.0
    %147 = vmatpush1.msra.mxu0 0.0
    %148 = vmatprep.subr.mxu0 0.0
    %149 = vmatpush1.msra.mxu0 0.0
    %150 = vmatprep.subr.mxu0 0.0
    %151 = vmatpush1.msra.mxu0 0.0
    %152 = vmatprep.subr.mxu0 0.0
    %153 = vmatpush1.msra.mxu0 0.0
    %154 = vmatprep.subr.mxu0 0.0
    %155 = vmatpush1.msra.mxu0 0.0
    %156 = vmatprep.subr.mxu0 0.0
    %157 = vmatpush1.msra.mxu0 0.0
    %158 = vmatprep.subr.mxu0 0.0
    %159 = vmatpush1.msra.mxu0 0.0
    %160 = vmatprep.subr.mxu0 0.0
    %161 = vmatpush1.msra.mxu0 0.0
    %162 = vmatprep.subr.mxu0 0.0
    %163 = vmatpush1.msra.mxu0 0.0
    %164 = vmatprep.subr.mxu0 0.0
    %165 = vmatpush1.msra.mxu0 0.0
    %166 = vmatprep.mubr.f32.mxu0 0.0
    %167 = vmatmul.mubr.f32.gmra.mrb[0].mxu0 %v100
    %v168 = vpop.f32.mrb[0].mxu0
    %v169 = vadd.f32 %v97, %v168
    %v170 = vpop.f32.mrb[0].mxu0
    %171 = vdwg.mxu0
    %v172 = vld [vmem:[#allocation8] sm:$0xff]
    %v173 = vld [vmem:[#allocation8 + $0x8] sm:$0xff]
    %v174 = vld [vmem:[#allocation8 + $0x10] sm:$0xff]
    %v175 = vld [vmem:[#allocation8 + $0x18] sm:$0xff]
    %v176 = vld [vmem:[%s6] sm:$0x1]
    %v178 = vsel %vm98, %v91, 0
    %180 = vmatprep.subr.mxu0 0.0
    %181 = vmatpush1.msra.mxu0 %v172
    %182 = vmatprep.subr.mxu0 0.0
    %183 = vmatpush1.msra.mxu0 %v173
    %184 = vmatprep.subr.mxu0 0.0
    %185 = vmatpush1.msra.mxu0 %v174
    %186 = vmatprep.subr.mxu0 0.0
    %187 = vmatpush1.msra.mxu0 %v175
    %188 = vmatprep.subr.mxu0 0.0
    %189 = vmatpush1.msra.mxu0 0.0
    %190 = vmatprep.subr.mxu0 0.0
    %191 = vmatpush1.msra.mxu0 0.0
    %192 = vmatprep.subr.mxu0 0.0
    %193 = vmatpush1.msra.mxu0 0.0
    %194 = vmatprep.subr.mxu0 0.0
    %195 = vmatpush1.msra.mxu0 0.0
    %196 = vmatprep.subr.mxu0 0.0
    %197 = vmatpush1.msra.mxu0 0.0
    %198 = vmatprep.subr.mxu0 0.0
    %199 = vmatpush1.msra.mxu0 0.0
    %200 = vmatprep.subr.mxu0 0.0
    %201 = vmatpush1.msra.mxu0 0.0
    %202 = vmatprep.subr.mxu0 0.0
    %203 = vmatpush1.msra.mxu0 0.0
    %204 = vmatprep.subr.mxu0 0.0
    %205 = vmatpush1.msra.mxu0 0.0
    %206 = vmatprep.subr.mxu0 0.0
    %207 = vmatpush1.msra.mxu0 0.0
    %208 = vmatprep.subr.mxu0 0.0
    %209 = vmatpush1.msra.mxu0 0.0
    %210 = vmatprep.subr.mxu0 0.0
    %211 = vmatpush1.msra.mxu0 0.0
    %212 = vmatprep.subr.mxu0 0.0
    %213 = vmatpush1.msra.mxu0 0.0
    %214 = vmatprep.subr.mxu0 0.0
    %215 = vmatpush1.msra.mxu0 0.0
    %216 = vmatprep.subr.mxu0 0.0
    %217 = vmatpush1.msra.mxu0 0.0
    %218 = vmatprep.subr.mxu0 0.0
    %219 = vmatpush1.msra.mxu0 0.0
    %220 = vmatprep.subr.mxu0 0.0
    %221 = vmatpush1.msra.mxu0 0.0
    %222 = vmatprep.subr.mxu0 0.0
    %223 = vmatpush1.msra.mxu0 0.0
    %224 = vmatprep.subr.mxu0 0.0
    %225 = vmatpush1.msra.mxu0 0.0
    %226 = vmatprep.subr.mxu0 0.0
    %227 = vmatpush1.msra.mxu0 0.0
    %228 = vmatprep.subr.mxu0 0.0
    %229 = vmatpush1.msra.mxu0 0.0
    %230 = vmatprep.subr.mxu0 0.0
    %231 = vmatpush1.msra.mxu0 0.0
    %232 = vmatprep.subr.mxu0 0.0
    %233 = vmatpush1.msra.mxu0 0.0
    %234 = vmatprep.subr.mxu0 0.0
    %235 = vmatpush1.msra.mxu0 0.0
    %236 = vmatprep.subr.mxu0 0.0
    %237 = vmatpush1.msra.mxu0 0.0
    %238 = vmatprep.subr.mxu0 0.0
    %239 = vmatpush1.msra.mxu0 0.0
    %240 = vmatprep.subr.mxu0 0.0
    %241 = vmatpush1.msra.mxu0 0.0
    %242 = vmatprep.subr.mxu0 0.0
    %243 = vmatpush1.msra.mxu0 0.0
    %244 = vmatprep.mubr.f32.mxu0 0.0
    %245 = vmatmul.mubr.f32.gmra.mrb[0].mxu0 %v178
    %v246 = vpop.f32.mrb[0].mxu0
    %v247 = vadd.f32 %v176, %v246
    %v248 = vpop.f32.mrb[0].mxu0
    %249 = vdwg.mxu0
    %v250 = vadd.f32 %v247, %v169
    %v251 = vsub.f32 0.0, %v250
    %v252 = vmul.f32 %v251, 1.442695
    %v253 = vpow.pop %v252
    %v254 = vadd.f32 %v253, 1.0
    %v255 = vrcp.pop %v254
    %v256 = vmul.f32 1.0, %v255
    %258 = vrot.lane.b32.xlu0 %v169, 64
    %v259 = vpop.permute.xlu0 %258
    %v261 = vmul.f32 %v256, %v259
    %263 = vrot.lane.b32.xlu0 %v261, 64
    %v264 = vpop.permute.xlu0 %263
    %v266 = vadd.f32 %v247, %v264
    %v267 = vtanh.pop %v266
    %v268 = vsub.f32 1.0, %v256
    %270 = vrot.lane.b32.xlu0 %v267, 96
    %v271 = vpop.permute.xlu0 %270
    %v273 = vmul.f32 %v268, %v271
    %v274 = vlaneseq
    %v275 = vshrl.u32 %v274, 7
    %v276 = vsub.s32 0, %v275
    %v277 = vrot.slane %v92, %v276
    %278 = vrot.lane.b32.xlu0 %v277, 32
    %v279 = vpop.permute.xlu0 %278
    %v281 = vmul.f32 %v256, %v279
    %v282 = vadd.f32 %v273, %v281
    %v283 = vmul.f32 %v169, 0.5
    %v284 = vmul.f32 %v169, 0.70710677
    %vm285 = vcmp.ge.f32.partialorder %v284, 0.0
    %v286 = vsel %vm285, 1.0, -1.0
    %v287 = vand.u32 2147483647, %v284
    %v288 = vmul.f32 %v287, 0.3275911
    %v289 = vadd.f32 %v288, 1.0
    %v290 = vrcp.pop %v289
    %v291 = vmul.f32 1.0, %v290
    %v292 = vmul.f32 %v291, 1.0614054
    %v293 = vadd.f32 %v292, -1.4531521
    %v294 = vmul.f32 %v293, %v291
    %v295 = vadd.f32 %v294, 1.4214138
    %v296 = vmul.f32 %v295, %v291
    %v297 = vadd.f32 %v296, -0.28449672
    %v298 = vmul.f32 %v297, %v291
    %v299 = vadd.f32 %v298, 0.2548296
    %v300 = vmul.f32 %v299, %v291
    %v301 = vsub.f32 0.0, %v287
    %v302 = vmul.f32 %v301, %v287
    %v303 = vmul.f32 %v302, 1.442695
    %v304 = vpow.pop %v303
    %v305 = vmul.f32 %v300, %v304
    %v306 = vsub.f32 1.0, %v305
    %v307 = vmul.f32 %v286, %v306
    %v308 = vadd.f32 %v307, 1.0
    %v309 = vmul.f32 %v283, %v308
    %v310 = vld [vmem:[#allocation9] sm:$0xff]
    %v311 = vld [vmem:[#allocation9 + $0x8] sm:$0xff]
    %v312 = vld [vmem:[#allocation9 + $0x10] sm:$0xff]
    %v313 = vld [vmem:[#allocation9 + $0x18] sm:$0xff]
    %v314 = vld [vmem:[%s8] sm:$0x1]
    %316 = vrot.lane.b32.xlu0 %v309, 32
    %v317 = vpop.permute.xlu0 %316
    %v318 = vsel %vm98, %v317, 0
    %320 = vmatprep.subr.mxu0 0.0
    %321 = vmatpush1.msra.mxu0 %v310
    %322 = vmatprep.subr.mxu0 0.0
    %323 = vmatpush1.msra.mxu0 %v311
    %324 = vmatprep.subr.mxu0 0.0
    %325 = vmatpush1.msra.mxu0 %v312
    %326 = vmatprep.subr.mxu0 0.0
    %327 = vmatpush1.msra.mxu0 %v313
    %328 = vmatprep.subr.mxu0 0.0
    %329 = vmatpush1.msra.mxu0 0.0
    %330 = vmatprep.subr.mxu0 0.0
    %331 = vmatpush1.msra.mxu0 0.0
    %332 = vmatprep.subr.mxu0 0.0
    %333 = vmatpush1.msra.mxu0 0.0
    %334 = vmatprep.subr.mxu0 0.0
    %335 = vmatpush1.msra.mxu0 0.0
    %336 = vmatprep.subr.mxu0 0.0
    %337 = vmatpush1.msra.mxu0 0.0
    %338 = vmatprep.subr.mxu0 0.0
    %339 = vmatpush1.msra.mxu0 0.0
    %340 = vmatprep.subr.mxu0 0.0
    %341 = vmatpush1.msra.mxu0 0.0
    %342 = vmatprep.subr.mxu0 0.0
    %343 = vmatpush1.msra.mxu0 0.0
    %344 = vmatprep.subr.mxu0 0.0
    %345 = vmatpush1.msra.mxu0 0.0
    %346 = vmatprep.subr.mxu0 0.0
    %347 = vmatpush1.msra.mxu0 0.0
    %348 = vmatprep.subr.mxu0 0.0
    %349 = vmatpush1.msra.mxu0 0.0
    %350 = vmatprep.subr.mxu0 0.0
    %351 = vmatpush1.msra.mxu0 0.0
    %352 = vmatprep.subr.mxu0 0.0
    %353 = vmatpush1.msra.mxu0 0.0
    %354 = vmatprep.subr.mxu0 0.0
    %355 = vmatpush1.msra.mxu0 0.0
    %356 = vmatprep.subr.mxu0 0.0
    %357 = vmatpush1.msra.mxu0 0.0
    %358 = vmatprep.subr.mxu0 0.0
    %359 = vmatpush1.msra.mxu0 0.0
    %360 = vmatprep.subr.mxu0 0.0
    %361 = vmatpush1.msra.mxu0 0.0
    %362 = vmatprep.subr.mxu0 0.0
    %363 = vmatpush1.msra.mxu0 0.0
    %364 = vmatprep.subr.mxu0 0.0
    %365 = vmatpush1.msra.mxu0 0.0
    %366 = vmatprep.subr.mxu0 0.0
    %367 = vmatpush1.msra.mxu0 0.0
    %368 = vmatprep.subr.mxu0 0.0
    %369 = vmatpush1.msra.mxu0 0.0
    %370 = vmatprep.subr.mxu0 0.0
    %371 = vmatpush1.msra.mxu0 0.0
    %372 = vmatprep.subr.mxu0 0.0
    %373 = vmatpush1.msra.mxu0 0.0
    %374 = vmatprep.subr.mxu0 0.0
    %375 = vmatpush1.msra.mxu0 0.0
    %376 = vmatprep.subr.mxu0 0.0
    %377 = vmatpush1.msra.mxu0 0.0
    %378 = vmatprep.subr.mxu0 0.0
    %379 = vmatpush1.msra.mxu0 0.0
    %380 = vmatprep.subr.mxu0 0.0
    %381 = vmatpush1.msra.mxu0 0.0
    %382 = vmatprep.subr.mxu0 0.0
    %383 = vmatpush1.msra.mxu0 0.0
    %384 = vmatprep.mubr.f32.mxu0 0.0
    %385 = vmatmul.mubr.f32.gmra.mrb[0].mxu0 %v318
    %v386 = vpop.f32.mrb[0].mxu0
    %v387 = vadd.f32 %v314, %v386
    %v388 = vpop.f32.mrb[0].mxu0
    %389 = vdwg.mxu0
    %390 = vst [vmem:[#allocation11] sm:$0x1] %v387
    %392 = vrot.lane.b32.xlu0 %v282, 96
    %v393 = vpop.permute.xlu0 %392
    %v395 = vsel %vm98, %v393, 0.0
    %396 = vst [vmem:[#allocation11 + $0x1] sm:$0x1] %v395
    // Predicated region
    $region54: #{tpu_custom_call.1} parent=1 // pred_check
      _
    $region55: #{tpu_custom_call.1} parent=1 // pred_check_branch
      %398 = sbr.rel (0) target = $region57
    $region56: #{tpu_custom_call.1} parent=1 // pred_region
      %s400 = ssub.s32 32, 32
      %401 = vsyncadd [#allocation5], %s400
      %s403 = sshll.u32 [#allocation11], 4
      %s404 = int_to_ptr.vmem [resolvable:$true] %s403
      %406 = dma.vmem_to_hbm [thread:$0]  %s404, 32, %s9, [#allocation5]
    $region57: #{tpu_custom_call.1} parent=1 // pred_fallthru
      _
    // Predicated region
    $region58: #{tpu_custom_call.1} parent=1 // pred_check
      _
    $region59: #{tpu_custom_call.1} parent=1 // pred_check_branch
      %408 = sbr.rel (0) target = $region61
    $region60: #{tpu_custom_call.1} parent=1 // pred_region
      %409 = dma.done [#allocation5], 32
    $region61: #{tpu_custom_call.1} parent=1 // pred_fallthru
      _
    %410 = vsyncpa [#allocation4], 1
    %411 = vsyncpa [#allocation7], 1
    %412 = vsyncpa [#allocation10], 1
    %413 = vsyncpa [#allocation5], 1

</llo_original>
